<compile_context>
chip_gen: v7x
topology: tpu7x:2x2x1
jax: 0.10.0
libtpu: 0.0.40
codegen_flags: <defaults>
</compile_context>

<pallas_src>
import functools

import jax
import jax.numpy as jnp
from jax.experimental import pallas as pl
from jax.experimental.pallas import tpu as pltpu


def _round_up(a: int, b: int) -> int:
    return (a + b - 1) // b * b


def _ffn_kernel(x_ref, w1_ref, b1_ref, w2_ref, b2_ref, o_ref):
    # x_ref:  (tm, d_model)            compute dtype (f32 or bf16)
    # w1_ref: (d_model, d_ff)          compute dtype
    # b1_ref: (1, d_ff)                f32
    # w2_ref: (d_ff, d_model)          compute dtype
    # b2_ref: (1, d_model)             f32
    # o_ref:  (tm, d_model)            output dtype
    x = x_ref[...]
    # First matmul on the MXU, f32 accumulation; bias + Swish stay in f32 (VPU/EUP).
    h = jnp.dot(x, w1_ref[...], preferred_element_type=jnp.float32) + b1_ref[...]
    h = h * jax.nn.sigmoid(h)  # Swish
    # TODO(synk): dropout is identity at inference; training-mode dropout would need
    #             pltpu.prng_seed + pltpu.prng_random_bits masking here.
    out = jnp.dot(h.astype(w2_ref.dtype), w2_ref[...],
                  preferred_element_type=jnp.float32) + b2_ref[...]
    o_ref[...] = out.astype(o_ref.dtype)


def feed_forward(x, w1, b1, w2, b2, *, tm=256, compute_dtype=None,
                 vmem_limit_bytes=None):
    """x: (batch, seq, d_model) -> (batch, seq, d_model).

    tm:            row tile (rounded to a multiple of 8; 256-512 recommended).
    compute_dtype: dtype fed to the MXU (e.g. jnp.bfloat16). Defaults to x.dtype.
                   Accumulation and Swish are always f32.
    """
    B, S, d_model = x.shape
    d_ff = w1.shape[1]
    M = B * S
    out_dtype = x.dtype
    if compute_dtype is None:
        compute_dtype = x.dtype
    compute_dtype = jnp.dtype(compute_dtype)

    # --- row-tile selection + padding (no hard divisibility requirement) ---------
    tm_eff = max(8, min(_round_up(tm, 8), _round_up(M, 8)))
    M_pad = _round_up(M, tm_eff)

    x2d = x.reshape(M, d_model).astype(compute_dtype)
    if M_pad != M:
        x2d = jnp.pad(x2d, ((0, M_pad - M), (0, 0)))

    w1c = w1.astype(compute_dtype)
    w2c = w2.astype(compute_dtype)
    b1_2d = b1.reshape(1, d_ff).astype(jnp.float32)
    b2_2d = b2.reshape(1, d_model).astype(jnp.float32)

    grid = (M_pad // tm_eff,)  # keep >= 2 steps on v7x so both TCs are busy

    # --- advisory cost estimate ---------------------------------------------------
    itm = compute_dtype.itemsize
    flops = 2 * M_pad * d_model * d_ff * 2            # two matmuls
    transcendentals = M_pad * d_ff                    # sigmoid
    bytes_accessed = (x2d.size * itm
                      + w1c.size * itm + w2c.size * itm
                      + b1_2d.size * 4 + b2_2d.size * 4
                      + M_pad * d_model * jnp.dtype(out_dtype).itemsize)

    compiler_kwargs = dict(dimension_semantics=("parallel",))
    if vmem_limit_bytes is not None:
        compiler_kwargs["vmem_limit_bytes"] = vmem_limit_bytes

    out2d = pl.pallas_call(
        _ffn_kernel,
        out_shape=jax.ShapeDtypeStruct((M_pad, d_model), out_dtype),
        grid_spec=pltpu.PrefetchScalarGridSpec(
            num_scalar_prefetch=0,
            grid=grid,
            in_specs=[
                pl.BlockSpec((tm_eff, d_model), lambda i: (i, 0)),   # x rows
                pl.BlockSpec((d_model, d_ff), lambda i: (0, 0)),     # w1 (resident)
                pl.BlockSpec((1, d_ff), lambda i: (0, 0)),           # b1 (f32)
                pl.BlockSpec((d_ff, d_model), lambda i: (0, 0)),     # w2 (resident)
                pl.BlockSpec((1, d_model), lambda i: (0, 0)),        # b2 (f32)
            ],
            out_specs=pl.BlockSpec((tm_eff, d_model), lambda i: (i, 0)),
        ),
        compiler_params=pltpu.CompilerParams(**compiler_kwargs),
        cost_estimate=pl.CostEstimate(flops=flops,
                                      transcendentals=transcendentals,
                                      bytes_accessed=bytes_accessed),
    )(x2d, w1c, b1_2d, w2c, b2_2d)

    if M_pad != M:
        out2d = out2d[:M]
    return out2d.reshape(B, S, d_model)


def _reference(x, w1, b1, w2, b2):
    h = jnp.dot(x, w1) + b1
    h = h * jax.nn.sigmoid(h)
    return jnp.dot(h, w2) + b2


if __name__ == "__main__":
    key = jax.random.PRNGKey(0)
    kx, kw1, kb1, kw2, kb2, kx2 = jax.random.split(key, 6)

    # Small demo shapes (production Conformer dims would be 512 / 2048, which are
    # lane-dense multiples of 128; these toy dims are for the correctness check only).
    batch, seq, d_model, d_ff = 2, 8, 32, 64

    x = jax.random.normal(kx, (batch, seq, d_model), dtype=jnp.float32)

    # Deterministic parameter init (PyTorch nn.Linear-style uniform bounds).
    lim1 = 1.0 / (d_model ** 0.5)
    lim2 = 1.0 / (d_ff ** 0.5)
    w1 = jax.random.uniform(kw1, (d_model, d_ff), jnp.float32, -lim1, lim1)
    b1 = jax.random.uniform(kb1, (d_ff,), jnp.float32, -lim1, lim1)
    w2 = jax.random.uniform(kw2, (d_ff, d_model), jnp.float32, -lim2, lim2)
    b2 = jax.random.uniform(kb2, (d_model,), jnp.float32, -lim2, lim2)

    ref = _reference(x, w1, b1, w2, b2)

    # 1) f32 compute path (exact match vs reference).
    out = feed_forward(x, w1, b1, w2, b2)
    jax.block_until_ready(out)
    assert out.shape == (batch, seq, d_model)
    assert jnp.allclose(out, ref, atol=1e-5, rtol=1e-5), "f32 path mismatch"

    # 2) bf16 MXU path (f32 accumulation) -- looser tolerance vs f32 reference.
    out_bf16 = feed_forward(x, w1, b1, w2, b2, compute_dtype=jnp.bfloat16)
    jax.block_until_ready(out_bf16)
    assert jnp.allclose(out_bf16, ref, atol=5e-2, rtol=5e-2), "bf16 path mismatch"

    # 3) Ragged row count (M not a multiple of the tile) exercises the pad/slice path.
    x_odd = jax.random.normal(kx2, (3, 5, d_model), dtype=jnp.float32)
    out_odd = feed_forward(x_odd, w1, b1, w2, b2, tm=256)
    jax.block_until_ready(out_odd)
    ref_odd = _reference(x_odd, w1, b1, w2, b2)
    assert out_odd.shape == (3, 5, d_model)
    assert jnp.allclose(out_odd, ref_odd, atol=1e-5, rtol=1e-5), "ragged path mismatch"

    print("KERNEL_OK")
</pallas_src>

<mosaic_0001>
module attributes {stable_mosaic.version = 11 : i64} {
  func.func @_ffn_kernel(%arg0: i32, %arg1: memref<16x32xf32, #tpu.memory_space<vmem>>, %arg2: memref<32x64xf32, #tpu.memory_space<vmem>>, %arg3: memref<1x64xf32, #tpu.memory_space<vmem>>, %arg4: memref<64x32xf32, #tpu.memory_space<vmem>>, %arg5: memref<1x32xf32, #tpu.memory_space<vmem>>, %arg6: memref<16x32xf32, #tpu.memory_space<vmem>>) attributes {dimension_semantics = [#tpu.dimension_semantics<parallel>], iteration_bounds = array<i64: 1>, scalar_prefetch = 0 : i64, scratch_operands = 0 : i64, tpu.core_type = #tpu.core_type<tc>, window_params = [{transform_indices = @transform_0, window_bounds = array<i64: 16, 32>}, {pipeline_mode = #tpu.pipeline_mode<synchronous>, transform_indices = @transform_1, window_bounds = array<i64: 32, 64>}, {pipeline_mode = #tpu.pipeline_mode<synchronous>, transform_indices = @transform_2, window_bounds = array<i64: 1, 64>}, {pipeline_mode = #tpu.pipeline_mode<synchronous>, transform_indices = @transform_3, window_bounds = array<i64: 64, 32>}, {pipeline_mode = #tpu.pipeline_mode<synchronous>, transform_indices = @transform_4, window_bounds = array<i64: 1, 32>}, {transform_indices = @transform_5, window_bounds = array<i64: 16, 32>}]} {
    %c0 = arith.constant 0 : index
    %c0_0 = arith.constant 0 : index
    %0 = vector.load %arg1[%c0, %c0_0] : memref<16x32xf32, #tpu.memory_space<vmem>>, vector<16x32xf32>
    %c0_1 = arith.constant 0 : index
    %c0_2 = arith.constant 0 : index
    %1 = vector.load %arg2[%c0_1, %c0_2] : memref<32x64xf32, #tpu.memory_space<vmem>>, vector<32x64xf32>
    %cst = arith.constant dense<0.000000e+00> : vector<16x64xf32>
    %2 = tpu.matmul %0, %1, %cst {dimension_numbers = #tpu.dot_dimension_numbers<[1], [0], [0], [1], [0, 0, 1, 1], [], []>} : vector<16x32xf32>, vector<32x64xf32>, vector<16x64xf32> -> vector<16x64xf32>
    %c0_3 = arith.constant 0 : index
    %c0_4 = arith.constant 0 : index
    %3 = vector.load %arg3[%c0_3, %c0_4] : memref<1x64xf32, #tpu.memory_space<vmem>>, vector<1x64xf32>
    %4 = vector.broadcast %3 : vector<1x64xf32> to vector<16x64xf32>
    %5 = arith.addf %2, %4 : vector<16x64xf32>
    %6 = arith.negf %5 : vector<16x64xf32>
    %7 = math.exp %6 : vector<16x64xf32>
    %cst_5 = arith.constant 1.000000e+00 : f32
    %8 = vector.broadcast %cst_5 : f32 to vector<16x64xf32>
    %9 = arith.addf %8, %7 : vector<16x64xf32>
    %10 = arith.divf %8, %9 : vector<16x64xf32>
    %11 = arith.mulf %5, %10 : vector<16x64xf32>
    %c0_6 = arith.constant 0 : index
    %c0_7 = arith.constant 0 : index
    %12 = vector.load %arg4[%c0_6, %c0_7] : memref<64x32xf32, #tpu.memory_space<vmem>>, vector<64x32xf32>
    %cst_8 = arith.constant dense<0.000000e+00> : vector<16x32xf32>
    %13 = tpu.matmul %11, %12, %cst_8 {dimension_numbers = #tpu.dot_dimension_numbers<[1], [0], [0], [1], [0, 0, 1, 1], [], []>} : vector<16x64xf32>, vector<64x32xf32>, vector<16x32xf32> -> vector<16x32xf32>
    %c0_9 = arith.constant 0 : index
    %c0_10 = arith.constant 0 : index
    %14 = vector.load %arg5[%c0_9, %c0_10] : memref<1x32xf32, #tpu.memory_space<vmem>>, vector<1x32xf32>
    %15 = vector.broadcast %14 : vector<1x32xf32> to vector<16x32xf32>
    %16 = arith.addf %13, %15 : vector<16x32xf32>
    %c0_11 = arith.constant 0 : index
    %c0_12 = arith.constant 0 : index
    %17 = vector.load %arg6[%c0_11, %c0_12] : memref<16x32xf32, #tpu.memory_space<vmem>>, vector<16x32xf32>
    tpu.vector_store %arg6[%c0_11, %c0_12], %16 {strides = array<i32>} : memref<16x32xf32, #tpu.memory_space<vmem>>, vector<16x32xf32>,
    return
  }
  func.func @transform_0(%arg0: i32) -> (i32, i32) {
    %c0_i32 = arith.constant 0 : i32
    %c0_i32_0 = arith.constant 0 : i32
    return %arg0, %c0_i32 : i32, i32
  }
  func.func @transform_1(%arg0: i32) -> (i32, i32) {
    %c0_i32 = arith.constant 0 : i32
    %c0_i32_0 = arith.constant 0 : i32
    %c0_i32_1 = arith.constant 0 : i32
    return %c0_i32, %c0_i32_0 : i32, i32
  }
  func.func @transform_2(%arg0: i32) -> (i32, i32) {
    %c0_i32 = arith.constant 0 : i32
    %c0_i32_0 = arith.constant 0 : i32
    %c0_i32_1 = arith.constant 0 : i32
    return %c0_i32, %c0_i32_0 : i32, i32
  }
  func.func @transform_3(%arg0: i32) -> (i32, i32) {
    %c0_i32 = arith.constant 0 : i32
    %c0_i32_0 = arith.constant 0 : i32
    %c0_i32_1 = arith.constant 0 : i32
    return %c0_i32, %c0_i32_0 : i32, i32
  }
  func.func @transform_4(%arg0: i32) -> (i32, i32) {
    %c0_i32 = arith.constant 0 : i32
    %c0_i32_0 = arith.constant 0 : i32
    %c0_i32_1 = arith.constant 0 : i32
    return %c0_i32, %c0_i32_0 : i32, i32
  }
  func.func @transform_5(%arg0: i32) -> (i32, i32) {
    %c0_i32 = arith.constant 0 : i32
    %c0_i32_0 = arith.constant 0 : i32
    return %arg0, %c0_i32 : i32, i32
  }
}

</mosaic_0001>

<llo_original>
// kernel: tpu_custom_call.1
$region0: #{tpu_custom_call.1}
  #allocation0 [shape = 'u32[]', space=smem, size = 0x4, offset = 0x4, fixed_abs, tag = 'smem constant byte address 0x4 - core index']
  #allocation1 [shape = 'u32[144,128]{1,0:T(1,128)}', space=vmem, size = 0x12000, scoped, tag = 'internal scratch']
  %s0 = inlined_call_operand.vmem [shape: f32[16,32], index: 0, kind: input, shape index: {}]
  %s1 = inlined_call_operand.vmem [shape: f32[32,64], index: 1, kind: input, shape index: {}]
  %s2 = inlined_call_operand.vmem [shape: f32[1,64], index: 2, kind: input, shape index: {}]
  %s3 = inlined_call_operand.vmem [shape: f32[64,32], index: 3, kind: input, shape index: {}]
  %s4 = inlined_call_operand.vmem [shape: f32[1,32], index: 4, kind: input, shape index: {}]
  %s5 = inlined_call_operand.hbm [shape: f32[16,32], index: 5, kind: output, shape index: {}]
  %s6 = sld [smem:[#allocation0]]
  $region30: #{tpu_custom_call.1} parent=0
    _
  %s8 = ssub.s32 1, %s6
  %s9 = scalar_select 0, %s8, %s6
  $region1: #{tpu_custom_call.1} parent=0
    #allocation2 [shape = 'u8[8192]{0}', space=vmem, size = 0x2000, scoped, tag = 'output window, operand 0, single buffered']
    #allocation3 [shape = 's32[1]{0}', space=sflag, size = 0x4, scoped, tag = 'scoped memory for tpu_custom_call.1']
    %10 = vsyncpa [#allocation3], 0
    // Predicated region
    $region2: #{tpu_custom_call.1} parent=1 // pred_check
      _
    $region3: #{tpu_custom_call.1} parent=1 // pred_check_branch
      %12 = sbr.rel (0) target = $region5
    $region4: #{tpu_custom_call.1} parent=1 // pred_region
      _
    $region5: #{tpu_custom_call.1} parent=1 // pred_fallthru
      _
    // Predicated region
    $region6: #{tpu_custom_call.1} parent=1 // pred_check
      _
    $region7: #{tpu_custom_call.1} parent=1 // pred_check_branch
      %14 = sbr.rel (0) target = $region9
    $region8: #{tpu_custom_call.1} parent=1 // pred_region
      _
    $region9: #{tpu_custom_call.1} parent=1 // pred_fallthru
      _
    // Predicated region
    $region10: #{tpu_custom_call.1} parent=1 // pred_check
      _
    $region11: #{tpu_custom_call.1} parent=1 // pred_check_branch
      %16 = sbr.rel (0) target = $region13
    $region12: #{tpu_custom_call.1} parent=1 // pred_region
      _
    $region13: #{tpu_custom_call.1} parent=1 // pred_fallthru
      _
    // Predicated region
    $region14: #{tpu_custom_call.1} parent=1 // pred_check
      _
    $region15: #{tpu_custom_call.1} parent=1 // pred_check_branch
      %18 = sbr.rel (0) target = $region17
    $region16: #{tpu_custom_call.1} parent=1 // pred_region
      _
    $region17: #{tpu_custom_call.1} parent=1 // pred_fallthru
      _
    // Predicated region
    $region18: #{tpu_custom_call.1} parent=1 // pred_check
      _
    $region19: #{tpu_custom_call.1} parent=1 // pred_check_branch
      %20 = sbr.rel (0) target = $region21
    $region20: #{tpu_custom_call.1} parent=1 // pred_region
      _
    $region21: #{tpu_custom_call.1} parent=1 // pred_fallthru
      _
    %v21 = vld [vmem:[%s0] sm:$0xff]
    %v22 = vld [vmem:[%s0 + $0x8] sm:$0xff]
    %v23 = vld [vmem:[%s1] sm:$0xff]
    %v24 = vld [vmem:[%s1 + $0x8] sm:$0xff]
    %v25 = vld [vmem:[%s1 + $0x10] sm:$0xff]
    %v26 = vld [vmem:[%s1 + $0x18] sm:$0xff]
    %v27 = vld [vmem:[%s2] sm:$0x1]
    %v29 = vlaneseq
    %v30 = vshrl.u32 %v29, 7
    %v31 = vsub.s32 0, %v30
    %v32 = vrot.slane %v27, %v31
    %vm34 = vcmask 261120
    %v36 = vsel %vm34, %v21, 0
    %v39 = vsel %vm34, %v22, 0
    %41 = vmatprep.subr.mxu0 0.0
    %42 = vmatpush1.msra.mxu0 %v23
    %43 = vmatprep.subr.mxu0 0.0
    %44 = vmatpush1.msra.mxu0 %v24
    %45 = vmatprep.subr.mxu0 0.0
    %46 = vmatpush1.msra.mxu0 %v25
    %47 = vmatprep.subr.mxu0 0.0
    %48 = vmatpush1.msra.mxu0 %v26
    %49 = vmatprep.subr.mxu0 0.0
    %50 = vmatpush1.msra.mxu0 0.0
    %51 = vmatprep.subr.mxu0 0.0
    %52 = vmatpush1.msra.mxu0 0.0
    %53 = vmatprep.subr.mxu0 0.0
    %54 = vmatpush1.msra.mxu0 0.0
    %55 = vmatprep.subr.mxu0 0.0
    %56 = vmatpush1.msra.mxu0 0.0
    %57 = vmatprep.subr.mxu0 0.0
    %58 = vmatpush1.msra.mxu0 0.0
    %59 = vmatprep.subr.mxu0 0.0
    %60 = vmatpush1.msra.mxu0 0.0
    %61 = vmatprep.subr.mxu0 0.0
    %62 = vmatpush1.msra.mxu0 0.0
    %63 = vmatprep.subr.mxu0 0.0
    %64 = vmatpush1.msra.mxu0 0.0
    %65 = vmatprep.subr.mxu0 0.0
    %66 = vmatpush1.msra.mxu0 0.0
    %67 = vmatprep.subr.mxu0 0.0
    %68 = vmatpush1.msra.mxu0 0.0
    %69 = vmatprep.subr.mxu0 0.0
    %70 = vmatpush1.msra.mxu0 0.0
    %71 = vmatprep.subr.mxu0 0.0
    %72 = vmatpush1.msra.mxu0 0.0
    %73 = vmatprep.subr.mxu0 0.0
    %74 = vmatpush1.msra.mxu0 0.0
    %75 = vmatprep.subr.mxu0 0.0
    %76 = vmatpush1.msra.mxu0 0.0
    %77 = vmatprep.subr.mxu0 0.0
    %78 = vmatpush1.msra.mxu0 0.0
    %79 = vmatprep.subr.mxu0 0.0
    %80 = vmatpush1.msra.mxu0 0.0
    %81 = vmatprep.subr.mxu0 0.0
    %82 = vmatpush1.msra.mxu0 0.0
    %83 = vmatprep.subr.mxu0 0.0
    %84 = vmatpush1.msra.mxu0 0.0
    %85 = vmatprep.subr.mxu0 0.0
    %86 = vmatpush1.msra.mxu0 0.0
    %87 = vmatprep.subr.mxu0 0.0
    %88 = vmatpush1.msra.mxu0 0.0
    %89 = vmatprep.subr.mxu0 0.0
    %90 = vmatpush1.msra.mxu0 0.0
    %91 = vmatprep.subr.mxu0 0.0
    %92 = vmatpush1.msra.mxu0 0.0
    %93 = vmatprep.subr.mxu0 0.0
    %94 = vmatpush1.msra.mxu0 0.0
    %95 = vmatprep.subr.mxu0 0.0
    %96 = vmatpush1.msra.mxu0 0.0
    %97 = vmatprep.subr.mxu0 0.0
    %98 = vmatpush1.msra.mxu0 0.0
    %99 = vmatprep.subr.mxu0 0.0
    %100 = vmatpush1.msra.mxu0 0.0
    %101 = vmatprep.subr.mxu0 0.0
    %102 = vmatpush1.msra.mxu0 0.0
    %103 = vmatprep.subr.mxu0 0.0
    %104 = vmatpush1.msra.mxu0 0.0
    %105 = vmatprep.mubr.f32.mxu0 0.0
    %106 = vmatmul.mubr.f32.gmra.mrb[0].mxu0 %v36
    %v107 = vpop.f32.mrb[0].mxu0
    %v108 = vadd.f32 %v32, %v107
    %v109 = vpop.f32.mrb[0].mxu0
    %110 = vmatprep.mubr.f32.mxu0 0.0
    %111 = vmatmul.mubr.f32.gmra.mrb[0].mxu0 %v39
    %v112 = vpop.f32.mrb[0].mxu0
    %v113 = vadd.f32 %v32, %v112
    %v114 = vpop.f32.mrb[0].mxu0
    %115 = vdwg.mxu0
    %v116 = vxor.u32 %v108, 2147483648
    %v117 = vxor.u32 %v113, 2147483648
    %v118 = vmul.f32 %v116, 1.442695
    %v119 = vpow.pop %v118
    %v120 = vmul.f32 %v117, 1.442695
    %v121 = vpow.pop %v120
    %v122 = vadd.f32 %v119, 1.0
    %v123 = vadd.f32 %v121, 1.0
    %v124 = vrcp.pop %v122
    %v125 = vmul.f32 1.0, %v124
    %v126 = vrcp.pop %v123
    %v127 = vmul.f32 1.0, %v126
    %v128 = vmul.f32 %v108, %v125
    %v129 = vmul.f32 %v113, %v127
    %v130 = vld [vmem:[%s3] sm:$0xff]
    %v131 = vld [vmem:[%s3 + $0x8] sm:$0xff]
    %v132 = vld [vmem:[%s3 + $0x10] sm:$0xff]
    %v133 = vld [vmem:[%s3 + $0x18] sm:$0xff]
    %v134 = vld [vmem:[%s3 + $0x20] sm:$0xff]
    %v135 = vld [vmem:[%s3 + $0x28] sm:$0xff]
    %v136 = vld [vmem:[%s3 + $0x30] sm:$0xff]
    %v137 = vld [vmem:[%s3 + $0x38] sm:$0xff]
    %v138 = vld [vmem:[%s4] sm:$0x1]
    %v140 = vlaneseq
    %v141 = vshrl.u32 %v140, 7
    %v142 = vsub.s32 0, %v141
    %v143 = vrot.slane %v138, %v142
    %vm145 = vcmask 523264
    %v147 = vsel %vm145, %v128, 0
    %v150 = vsel %vm145, %v129, 0
    %152 = vmatprep.subr.mxu0 0.0
    %153 = vmatpush1.msra.mxu0 %v130
    %154 = vmatprep.subr.mxu0 0.0
    %155 = vmatpush1.msra.mxu0 %v131
    %156 = vmatprep.subr.mxu0 0.0
    %157 = vmatpush1.msra.mxu0 %v132
    %158 = vmatprep.subr.mxu0 0.0
    %159 = vmatpush1.msra.mxu0 %v133
    %160 = vmatprep.subr.mxu0 0.0
    %161 = vmatpush1.msra.mxu0 %v134
    %162 = vmatprep.subr.mxu0 0.0
    %163 = vmatpush1.msra.mxu0 %v135
    %164 = vmatprep.subr.mxu0 0.0
    %165 = vmatpush1.msra.mxu0 %v136
    %166 = vmatprep.subr.mxu0 0.0
    %167 = vmatpush1.msra.mxu0 %v137
    %168 = vmatprep.subr.mxu0 0.0
    %169 = vmatpush1.msra.mxu0 0.0
    %170 = vmatprep.subr.mxu0 0.0
    %171 = vmatpush1.msra.mxu0 0.0
    %172 = vmatprep.subr.mxu0 0.0
    %173 = vmatpush1.msra.mxu0 0.0
    %174 = vmatprep.subr.mxu0 0.0
    %175 = vmatpush1.msra.mxu0 0.0
    %176 = vmatprep.subr.mxu0 0.0
    %177 = vmatpush1.msra.mxu0 0.0
    %178 = vmatprep.subr.mxu0 0.0
    %179 = vmatpush1.msra.mxu0 0.0
    %180 = vmatprep.subr.mxu0 0.0
    %181 = vmatpush1.msra.mxu0 0.0
    %182 = vmatprep.subr.mxu0 0.0
    %183 = vmatpush1.msra.mxu0 0.0
    %184 = vmatprep.subr.mxu0 0.0
    %185 = vmatpush1.msra.mxu0 0.0
    %186 = vmatprep.subr.mxu0 0.0
    %187 = vmatpush1.msra.mxu0 0.0
    %188 = vmatprep.subr.mxu0 0.0
    %189 = vmatpush1.msra.mxu0 0.0
    %190 = vmatprep.subr.mxu0 0.0
    %191 = vmatpush1.msra.mxu0 0.0
    %192 = vmatprep.subr.mxu0 0.0
    %193 = vmatpush1.msra.mxu0 0.0
    %194 = vmatprep.subr.mxu0 0.0
    %195 = vmatpush1.msra.mxu0 0.0
    %196 = vmatprep.subr.mxu0 0.0
    %197 = vmatpush1.msra.mxu0 0.0
    %198 = vmatprep.subr.mxu0 0.0
    %199 = vmatpush1.msra.mxu0 0.0
    %200 = vmatprep.subr.mxu0 0.0
    %201 = vmatpush1.msra.mxu0 0.0
    %202 = vmatprep.subr.mxu0 0.0
    %203 = vmatpush1.msra.mxu0 0.0
    %204 = vmatprep.subr.mxu0 0.0
    %205 = vmatpush1.msra.mxu0 0.0
    %206 = vmatprep.subr.mxu0 0.0
    %207 = vmatpush1.msra.mxu0 0.0
    %208 = vmatprep.subr.mxu0 0.0
    %209 = vmatpush1.msra.mxu0 0.0
    %210 = vmatprep.subr.mxu0 0.0
    %211 = vmatpush1.msra.mxu0 0.0
    %212 = vmatprep.subr.mxu0 0.0
    %213 = vmatpush1.msra.mxu0 0.0
    %214 = vmatprep.subr.mxu0 0.0
    %215 = vmatpush1.msra.mxu0 0.0
    %216 = vmatprep.mubr.f32.mxu0 0.0
    %217 = vmatmul.mubr.f32.gmra.mrb[0].mxu0 %v147
    %v218 = vpop.f32.mrb[0].mxu0
    %v219 = vadd.f32 %v143, %v218
    %v220 = vpop.f32.mrb[0].mxu0
    %221 = vmatprep.mubr.f32.mxu0 0.0
    %222 = vmatmul.mubr.f32.gmra.mrb[0].mxu0 %v150
    %v223 = vpop.f32.mrb[0].mxu0
    %v224 = vadd.f32 %v143, %v223
    %v225 = vpop.f32.mrb[0].mxu0
    %226 = vdwg.mxu0
    %227 = vst.msk [vmem:[#allocation2] sm:$0xff] %vm34, %v219
    %228 = vst.msk [vmem:[#allocation2 + $0x8] sm:$0xff] %vm34, %v224
    // Predicated region
    $region22: #{tpu_custom_call.1} parent=1 // pred_check
      _
    $region23: #{tpu_custom_call.1} parent=1 // pred_check_branch
      %230 = sbr.rel (0) target = $region25
    $region24: #{tpu_custom_call.1} parent=1 // pred_region
      %s232 = ssub.s32 256, 256
      %233 = vsyncadd [#allocation3], %s232
      %s234 = sshll.u32 [#allocation2], 4
      %s235 = int_to_ptr.vmem [resolvable:$true] %s234
      %240 = dma.vmem_to_hbm [thread:$0]  %s235, 256, %s5, [#allocation3], 128, 128, 8
    $region25: #{tpu_custom_call.1} parent=1 // pred_fallthru
      _
    // Predicated region
    $region26: #{tpu_custom_call.1} parent=1 // pred_check
      _
    $region27: #{tpu_custom_call.1} parent=1 // pred_check_branch
      %242 = sbr.rel (0) target = $region29
    $region28: #{tpu_custom_call.1} parent=1 // pred_region
      %243 = dma.done [#allocation3], 256
    $region29: #{tpu_custom_call.1} parent=1 // pred_fallthru
      _
    %244 = vsyncpa [#allocation3], 1

</llo_original>
